<compile_context>
chip_gen: v5e
topology: v5e:2x2
jax: 0.10.0
libtpu: 0.0.40
codegen_flags: <defaults>
</compile_context>

<pallas_src>
import jax
import jax.numpy as jnp
from jax.experimental import pallas as pl
from jax.experimental.pallas import tpu as pltpu


def _round_up(x, m):
    return (x + m - 1) // m * m


def _pick_tile_128(size, max_tile):
    """Pad `size` to a multiple of 128 and pick the largest tile (multiple of 128,
    <= max_tile) that divides the padded size -> zero wasted MXU work / DMA."""
    padded = _round_up(size, 128)
    tile = 128
    for cand in range(max_tile, 0, -128):
        if padded % cand == 0:
            tile = cand
            break
    return tile, padded


# ---------------------------------------------------------------------------
# Pallas kernel 1: tiled matmul, fused bias, bf16 operands, f32 accumulation
# ---------------------------------------------------------------------------
def _matmul_bias_kernel(a_ref, b_ref, bias_ref, o_ref):
    k = pl.program_id(2)
    part = jnp.dot(a_ref[...], b_ref[...], preferred_element_type=jnp.float32)

    @pl.when(k == 0)
    def _():
        o_ref[...] = part + bias_ref[...]

    @pl.when(k > 0)
    def _():
        o_ref[...] += part


def conv_matmul_bias(a, b, bias):
    """(M, K) @ (K, Nc) + bias -> (Mp, Np) float32 (rows/cols padded to tiles).

    Operands are cast to bf16 (MXU-native); accumulation stays f32 directly in the
    output block, whose block index is constant over the K grid axis (accumulator
    pattern), so no separate scratch buffer is needed.
    """
    M, K = a.shape
    K2, Nc = b.shape
    assert K == K2

    TM = 256 if M >= 256 else _round_up(M, 8)
    Mp = _round_up(M, TM)
    BK, Kp = _pick_tile_128(K, 512)
    BN, Np = _pick_tile_128(Nc, 256)

    a_p = jnp.pad(a, ((0, Mp - M), (0, Kp - K))).astype(jnp.bfloat16)
    b_p = jnp.pad(b, ((0, Kp - K), (0, Np - Nc))).astype(jnp.bfloat16)
    bias_p = jnp.pad(bias.astype(jnp.float32), (0, Np - Nc)).reshape(1, Np)

    # Double-buffered bf16 A/B blocks + f32 bias blocks + resident f32 out block.
    tile_bytes = 2 * (TM * BK + BK * BN) * 2 + 2 * BN * 4 + 2 * TM * BN * 4
    vmem_limit = int(min(max(4 * tile_bytes, 8 << 20), 48 << 20))

    return pl.pallas_call(
        _matmul_bias_kernel,
        out_shape=jax.ShapeDtypeStruct((Mp, Np), jnp.float32),
        grid_spec=pltpu.PrefetchScalarGridSpec(
            num_scalar_prefetch=0,
            grid=(Mp // TM, Np // BN, Kp // BK),
            in_specs=[
                pl.BlockSpec((TM, BK), lambda i, j, k: (i, k)),
                pl.BlockSpec((BK, BN), lambda i, j, k: (k, j)),
                pl.BlockSpec((1, BN), lambda i, j, k: (0, j)),
            ],
            out_specs=pl.BlockSpec((TM, BN), lambda i, j, k: (i, j)),
        ),
        compiler_params=pltpu.CompilerParams(
            dimension_semantics=("parallel", "parallel", "arbitrary"),
            vmem_limit_bytes=vmem_limit,
        ),
    )(a_p, b_p, bias_p)


# ---------------------------------------------------------------------------
# Pallas kernel 2: fused InstanceNorm2d (affine=False, instance stats) + LeakyReLU
# ---------------------------------------------------------------------------
def _make_in_lrelu_kernel(p_true, eps, neg_slope):
    inv_p = 1.0 / float(p_true)

    def kernel(y_ref, o_ref):
        y = y_ref[...]                                          # (1, Pp, Cp) f32
        row = jax.lax.broadcasted_iota(jnp.int32, y.shape, 1)
        valid = row < p_true                                    # mask padded rows
        y_m = jnp.where(valid, y, 0.0)
        mean = jnp.sum(y_m, axis=1, keepdims=True) * inv_p      # per (n, c)
        d = jnp.where(valid, y - mean, 0.0)
        var = jnp.sum(d * d, axis=1, keepdims=True) * inv_p     # biased variance
        z = (y - mean) * jax.lax.rsqrt(var + eps)
        o_ref[...] = jnp.where(z >= 0.0, z, neg_slope * z)

    return kernel


def instance_norm_lrelu(y, *, p_true, eps, negative_slope):
    """y: (N, Pp, Cp) f32 with Pp % 8 == 0 and Cp % 128 == 0 (lane-dense channels)."""
    N, Pp, Cp = y.shape
    kernel = _make_in_lrelu_kernel(p_true, eps, negative_slope)
    return pl.pallas_call(
        kernel,
        out_shape=jax.ShapeDtypeStruct((N, Pp, Cp), jnp.float32),
        grid=(N,),
        in_specs=[pl.BlockSpec((1, Pp, Cp), lambda n: (n, 0, 0))],
        out_specs=pl.BlockSpec((1, Pp, Cp), lambda n: (n, 0, 0)),
        compiler_params=pltpu.CompilerParams(
            dimension_semantics=("parallel",),
        ),
    )(y)


# ---------------------------------------------------------------------------
# Ck forward
# ---------------------------------------------------------------------------
def ck_forward(params, x_nchw, *, stride=2, eps=1e-5, negative_slope=0.01):
    w, b = params                       # w: (Cout, Cin, 4, 4), b: (Cout,)
    c_out = w.shape[0]

    x = jnp.transpose(x_nchw, (0, 2, 3, 1)).astype(jnp.float32)   # NCHW -> NHWC
    # nn.ConstantPad2d(1, 1.0): pad H/W by 1 on each side with value 1.0
    xp = jnp.pad(x, ((0, 0), (1, 1), (1, 1), (0, 0)), constant_values=1.0)
    N, Hp, Wp, c_in = xp.shape
    Ho = (Hp - 4) // stride + 1
    Wo = (Wp - 4) // stride + 1

    # im2col for the 4x4 / stride-2 conv (4x data redundancy, not 9x/16x).
    # TODO(synk): for large images, stream the 16 taps through the matmul's K grid
    # axis (phase-split shifted windows) instead of materializing the patches tensor.
    cols = [xp[:, ky:ky + stride * (Ho - 1) + 1:stride,
                  kx:kx + stride * (Wo - 1) + 1:stride, :]
            for ky in range(4) for kx in range(4)]
    patches = jnp.concatenate(cols, axis=-1).reshape(N * Ho * Wo, 16 * c_in)
    wk = jnp.transpose(w, (2, 3, 1, 0)).reshape(16 * c_in, c_out)

    y_full = conv_matmul_bias(patches, wk, b)      # (Mp, Np) f32, conv bias fused
    Np = y_full.shape[1]
    M = N * Ho * Wo
    P = Ho * Wo
    y = y_full[:M].reshape(N, P, Np)               # padded channels stay (they norm to 0)

    Pp = _round_up(P, 8)
    if Pp != P:
        y = jnp.pad(y, ((0, 0), (0, Pp - P), (0, 0)))

    z = instance_norm_lrelu(y, p_true=P, eps=eps, negative_slope=negative_slope)
    out = z[:, :P, :c_out].reshape(N, Ho, Wo, c_out)
    return jnp.transpose(out, (0, 3, 1, 2))        # NHWC -> NCHW


# ---------------------------------------------------------------------------
# Deterministic synthetic parameters & demo run
# ---------------------------------------------------------------------------
if __name__ == "__main__":
    key = jax.random.PRNGKey(0)
    k_w, k_b, k_x = jax.random.split(key, 3)

    c_in, c_out, s = 4, 8, 2
    w = jax.random.normal(k_w, (c_out, c_in, 4, 4), jnp.float32) * 0.05
    b = jax.random.normal(k_b, (c_out,), jnp.float32) * 0.05
    params = (w, b)

    x = jax.random.normal(k_x, (2, c_in, 16, 16), jnp.float32)    # NCHW input

    fwd = jax.jit(ck_forward)
    out = fwd(params, x)
    out = jax.block_until_ready(out)

    # ConstantPad2d(1) -> 18x18, Conv(4, s=2) -> (18-4)//2 + 1 = 8
    assert out.shape == (2, c_out, 8, 8), out.shape
    assert bool(jnp.all(jnp.isfinite(out)))
    print("KERNEL_OK")
</pallas_src>

<mosaic_0001>
module attributes {stable_mosaic.version = 11 : i64} {
  func.func @kernel(%arg0: i32, %arg1: memref<1x64x128xf32, #tpu.memory_space<vmem>>, %arg2: memref<1x64x128xf32, #tpu.memory_space<vmem>>) attributes {dimension_semantics = [#tpu.dimension_semantics<parallel>], iteration_bounds = array<i64: 2>, scalar_prefetch = 0 : i64, scratch_operands = 0 : i64, tpu.core_type = #tpu.core_type<tc>, window_params = [{transform_indices = @transform_0, window_bounds = array<i64: 1, 64, 128>}, {transform_indices = @transform_1, window_bounds = array<i64: 1, 64, 128>}]} {
    %c0 = arith.constant 0 : index
    %c0_0 = arith.constant 0 : index
    %c0_1 = arith.constant 0 : index
    %0 = vector.load %arg1[%c0, %c0_0, %c0_1] : memref<1x64x128xf32, #tpu.memory_space<vmem>>, vector<1x64x128xf32>
    %1 = tpu.iota {dimensions = array<i32: 1>} : vector<1x64x128xi32>
    %c64_i32 = arith.constant 64 : i32
    %2 = vector.broadcast %c64_i32 : i32 to vector<1x64x128xi32>
    %3 = arith.cmpi slt, %1, %2 : vector<1x64x128xi32>
    %cst = arith.constant 0.000000e+00 : f32
    %4 = vector.broadcast %cst : f32 to vector<1x64x128xf32>
    %5 = arith.select %3, %0, %4 : vector<1x64x128xi1>, vector<1x64x128xf32>
    %cst_2 = arith.constant dense<0.000000e+00> : vector<1x128xf32>
    %6 = vector.multi_reduction <add>, %5, %cst_2 [1] : vector<1x64x128xf32> to vector<1x128xf32>
    %7 = vector.shape_cast %6 : vector<1x128xf32> to vector<1x1x128xf32>
    %cst_3 = arith.constant 1.562500e-02 : f32
    %8 = vector.broadcast %cst_3 : f32 to vector<1x1x128xf32>
    %9 = arith.mulf %7, %8 : vector<1x1x128xf32>
    %10 = vector.broadcast %9 : vector<1x1x128xf32> to vector<1x64x128xf32>
    %11 = arith.subf %0, %10 : vector<1x64x128xf32>
    %cst_4 = arith.constant 0.000000e+00 : f32
    %12 = vector.broadcast %cst_4 : f32 to vector<1x64x128xf32>
    %13 = arith.select %3, %11, %12 : vector<1x64x128xi1>, vector<1x64x128xf32>
    %14 = arith.mulf %13, %13 : vector<1x64x128xf32>
    %cst_5 = arith.constant dense<0.000000e+00> : vector<1x128xf32>
    %15 = vector.multi_reduction <add>, %14, %cst_5 [1] : vector<1x64x128xf32> to vector<1x128xf32>
    %16 = vector.shape_cast %15 : vector<1x128xf32> to vector<1x1x128xf32>
    %cst_6 = arith.constant 1.562500e-02 : f32
    %17 = vector.broadcast %cst_6 : f32 to vector<1x1x128xf32>
    %18 = arith.mulf %16, %17 : vector<1x1x128xf32>
    %19 = vector.broadcast %9 : vector<1x1x128xf32> to vector<1x64x128xf32>
    %20 = arith.subf %0, %19 : vector<1x64x128xf32>
    %cst_7 = arith.constant 9.99999974E-6 : f32
    %21 = vector.broadcast %cst_7 : f32 to vector<1x1x128xf32>
    %22 = arith.addf %18, %21 : vector<1x1x128xf32>
    %23 = math.rsqrt %22 : vector<1x1x128xf32>
    %24 = vector.broadcast %23 : vector<1x1x128xf32> to vector<1x64x128xf32>
    %25 = arith.mulf %20, %24 : vector<1x64x128xf32>
    %cst_8 = arith.constant 0.000000e+00 : f32
    %26 = vector.broadcast %cst_8 : f32 to vector<1x64x128xf32>
    %27 = arith.cmpf oge, %25, %26 : vector<1x64x128xf32>
    %cst_9 = arith.constant 0.00999999977 : f32
    %28 = vector.broadcast %cst_9 : f32 to vector<1x64x128xf32>
    %29 = arith.mulf %28, %25 : vector<1x64x128xf32>
    %30 = arith.select %27, %25, %29 : vector<1x64x128xi1>, vector<1x64x128xf32>
    %c0_10 = arith.constant 0 : index
    %c0_11 = arith.constant 0 : index
    %c0_12 = arith.constant 0 : index
    %31 = vector.load %arg2[%c0_10, %c0_11, %c0_12] : memref<1x64x128xf32, #tpu.memory_space<vmem>>, vector<1x64x128xf32>
    tpu.vector_store %arg2[%c0_10, %c0_11, %c0_12], %30 {strides = array<i32>} : memref<1x64x128xf32, #tpu.memory_space<vmem>>, vector<1x64x128xf32>,
    return
  }
  func.func @transform_0(%arg0: i32) -> (i32, i32, i32) {
    %c0_i32 = arith.constant 0 : i32
    %c0_i32_0 = arith.constant 0 : i32
    %c0_i32_1 = arith.constant 0 : i32
    return %arg0, %c0_i32, %c0_i32_0 : i32, i32, i32
  }
  func.func @transform_1(%arg0: i32) -> (i32, i32, i32) {
    %c0_i32 = arith.constant 0 : i32
    %c0_i32_0 = arith.constant 0 : i32
    %c0_i32_1 = arith.constant 0 : i32
    return %arg0, %c0_i32, %c0_i32_0 : i32, i32, i32
  }
}

module attributes {stable_mosaic.version = 11 : i64} {
  func.func @_matmul_bias_kernel(%arg0: i32, %arg1: i32, %arg2: i32, %arg3: memref<128x128xbf16, #tpu.memory_space<vmem>>, %arg4: memref<128x128xbf16, #tpu.memory_space<vmem>>, %arg5: memref<1x128xf32, #tpu.memory_space<vmem>>, %arg6: memref<128x128xf32, #tpu.memory_space<vmem>>) attributes {dimension_semantics = [#tpu.dimension_semantics<parallel>, #tpu.dimension_semantics<parallel>, #tpu.dimension_semantics<arbitrary>], iteration_bounds = array<i64: 1, 1, 1>, scalar_prefetch = 0 : i64, scratch_operands = 0 : i64, tpu.core_type = #tpu.core_type<tc>, window_params = [{transform_indices = @transform_0, window_bounds = array<i64: 128, 128>}, {transform_indices = @transform_1, window_bounds = array<i64: 128, 128>}, {transform_indices = @transform_2, window_bounds = array<i64: 1, 128>}, {transform_indices = @transform_3, window_bounds = array<i64: 128, 128>}]} {
    %c0 = arith.constant 0 : index
    %c0_0 = arith.constant 0 : index
    %0 = vector.load %arg3[%c0, %c0_0] : memref<128x128xbf16, #tpu.memory_space<vmem>>, vector<128x128xbf16>
    %c0_1 = arith.constant 0 : index
    %c0_2 = arith.constant 0 : index
    %1 = vector.load %arg4[%c0_1, %c0_2] : memref<128x128xbf16, #tpu.memory_space<vmem>>, vector<128x128xbf16>
    %cst = arith.constant dense<0.000000e+00> : vector<128x128xf32>
    %2 = tpu.matmul %0, %1, %cst {dimension_numbers = #tpu.dot_dimension_numbers<[1], [0], [0], [1], [0, 0, 1, 1], [], []>} : vector<128x128xbf16>, vector<128x128xbf16>, vector<128x128xf32> -> vector<128x128xf32>
    %c0_i32 = arith.constant 0 : i32
    %3 = arith.cmpi eq, %arg2, %c0_i32 : i32
    %4 = arith.extui %3 : i1 to i32
    %c0_i32_3 = arith.constant 0 : i32
    %5 = arith.cmpi ne, %4, %c0_i32_3 : i32
    scf.if %5 {
      %c0_6 = arith.constant 0 : index
      %c0_7 = arith.constant 0 : index
      %9 = vector.load %arg5[%c0_6, %c0_7] : memref<1x128xf32, #tpu.memory_space<vmem>>, vector<1x128xf32>
      %10 = vector.broadcast %9 : vector<1x128xf32> to vector<128x128xf32>
      %11 = arith.addf %2, %10 : vector<128x128xf32>
      %c0_8 = arith.constant 0 : index
      %c0_9 = arith.constant 0 : index
      %12 = vector.load %arg6[%c0_8, %c0_9] : memref<128x128xf32, #tpu.memory_space<vmem>>, vector<128x128xf32>
      tpu.vector_store %arg6[%c0_8, %c0_9], %11 {strides = array<i32>} : memref<128x128xf32, #tpu.memory_space<vmem>>, vector<128x128xf32>,
    } else {
    }
    %c0_i32_4 = arith.constant 0 : i32
    %6 = arith.cmpi sgt, %arg2, %c0_i32_4 : i32
    %7 = arith.extui %6 : i1 to i32
    %c0_i32_5 = arith.constant 0 : i32
    %8 = arith.cmpi ne, %7, %c0_i32_5 : i32
    scf.if %8 {
      %c0_6 = arith.constant 0 : index
      %c0_7 = arith.constant 0 : index
      %9 = vector.load %arg6[%c0_6, %c0_7] : memref<128x128xf32, #tpu.memory_space<vmem>>, vector<128x128xf32>
      %10 = arith.addf %9, %2 : vector<128x128xf32>
      %c0_8 = arith.constant 0 : index
      %c0_9 = arith.constant 0 : index
      %11 = vector.load %arg6[%c0_8, %c0_9] : memref<128x128xf32, #tpu.memory_space<vmem>>, vector<128x128xf32>
      tpu.vector_store %arg6[%c0_8, %c0_9], %10 {strides = array<i32>} : memref<128x128xf32, #tpu.memory_space<vmem>>, vector<128x128xf32>,
    } else {
    }
    return
  }
  func.func @transform_0(%arg0: i32, %arg1: i32, %arg2: i32) -> (i32, i32) {
    %c0_i32 = arith.constant 0 : i32
    return %arg0, %arg2 : i32, i32
  }
  func.func @transform_1(%arg0: i32, %arg1: i32, %arg2: i32) -> (i32, i32) {
    %c0_i32 = arith.constant 0 : i32
    return %arg2, %arg1 : i32, i32
  }
  func.func @transform_2(%arg0: i32, %arg1: i32, %arg2: i32) -> (i32, i32) {
    %c0_i32 = arith.constant 0 : i32
    %c0_i32_0 = arith.constant 0 : i32
    return %c0_i32, %arg1 : i32, i32
  }
  func.func @transform_3(%arg0: i32, %arg1: i32, %arg2: i32) -> (i32, i32) {
    %c0_i32 = arith.constant 0 : i32
    return %arg0, %arg1 : i32, i32
  }
}

</mosaic_0001>

<llo_original>
// kernel: ck_forward.3
$region0: #{ck_forward.3}
  #allocation0 [shape = 'u32[]', space=smem, size = 0x4, offset = 0x4, fixed_abs, tag = 'smem constant byte address 0x4 - core index']
  #allocation1 [shape = 'u32[72,128]{1,0:T(1,128)}', space=vmem, size = 0x9000, scoped, tag = 'internal scratch']
  %s0 = inlined_call_operand.vmem [shape: f32[2,64,128], index: 0, kind: input, shape index: {}]
  %s1 = inlined_call_operand.vmem [shape: f32[2,64,128], index: 1, kind: output, shape index: {}]
  %s2 = sld [smem:[#allocation0]]
  $region37: #{ck_forward.3} parent=0
    _
  %s4 = ssub.s32 1, %s2
  %s5 = scalar_select 0, %s4, %s2
  loop: start=0, step=1, limit=4
  $region2: #{ck_forward.3} parent=0 // loop_pre_header
    _
  $region3: #{ck_forward.3} parent=0 // loop_header
    %s7 = sphi 0, %s11
    %p8 = scmp.ge.s32.totalorder %s7, 4
    %s17 = sphi 0, %s19
    %s20 = sphi 0, %s17
    %s21 = sphi 0, %s20
    %s37 = sphi 0, %s21
    %s43 = sphi 0, %s45
    %s46 = sphi 0, %s43
    %s47 = sphi 0, %s46
    %s63 = sphi 0, %s47
  $region4: #{ck_forward.3} parent=0 // loop_header_branch
    %10 = sbr.rel (%p8) target = $region8
  $region5: #{ck_forward.3} parent=0 // loop_body
    %s12 = ssub.s32 %s7, 1
    %s13 = ssub.s32 %s7, 2
    %s14 = sadd.s32 %s7, 1
    %s15 = ssub.s32 %s7, %s14
    %p16 = scmp.eq.s32.totalorder %s15, 0
    %s18 = sadd.s32 %s17, 1
    %s19 = scalar_select %p16, %s17, %s18
    %p22 = pneg %p16
    %p23 = scmp.eq.s32.totalorder %s7, 1
    %p24 = por %p22, %p23
    %p25 = scmp.ne.s32.totalorder %s17, %s20
    %p26 = scmp.eq.s32.totalorder %s7, 0
    %p27 = por %p25, %p26
    %p28 = scmp.ne.s32.totalorder %s17, %s20
    %p29 = scmp.eq.s32.totalorder %s12, 1
    %p30 = por %p28, %p29
    %p31 = scmp.ne.s32.totalorder %s20, %s21
    %p32 = scmp.eq.s32.totalorder %s12, 0
    %p33 = por %p31, %p32
    %p34 = scmp.ne.s32.totalorder %s20, %s21
    %p35 = scmp.eq.s32.totalorder %s13, 1
    %p36 = por %p34, %p35
    %p38 = scmp.ne.s32.totalorder %s21, %s37
    %p39 = scmp.eq.s32.totalorder %s13, 0
    %p40 = por %p38, %p39
    %s41 = ssub.s32 %s7, %s14
    %p42 = scmp.eq.s32.totalorder %s41, 0
    %s44 = sadd.s32 %s43, 1
    %s45 = scalar_select %p42, %s43, %s44
    %p48 = pneg %p42
    %p49 = scmp.eq.s32.totalorder %s7, 1
    %p50 = por %p48, %p49
    %p51 = scmp.ne.s32.totalorder %s43, %s46
    %p52 = scmp.eq.s32.totalorder %s7, 0
    %p53 = por %p51, %p52
    %p54 = scmp.ne.s32.totalorder %s43, %s46
    %p55 = scmp.eq.s32.totalorder %s12, 1
    %p56 = por %p54, %p55
    %p57 = scmp.ne.s32.totalorder %s46, %s47
    %p58 = scmp.eq.s32.totalorder %s12, 0
    %p59 = por %p57, %p58
    %p60 = scmp.ne.s32.totalorder %s46, %s47
    %p61 = scmp.eq.s32.totalorder %s13, 1
    %p62 = por %p60, %p61
    %p64 = scmp.ne.s32.totalorder %s47, %s63
    %p65 = scmp.eq.s32.totalorder %s13, 0
    %p66 = por %p64, %p65
    %p67 = scmp.le.s32.totalorder 1, %s7
    %p68 = scmp.lt.s32.totalorder %s7, 3
    %p69 = pnand %p67, %p68
    %p70 = pneg %p69
    // Predicated region
    $region9: #{ck_forward.3} parent=5 // pred_check
      _
    $region10: #{ck_forward.3} parent=5 // pred_check_branch
      %72 = sbr.rel (%p69) target = $region12
    $region11: #{ck_forward.3} parent=5 // pred_region
      %s73 = ssub.s32 %s7, 1
    $region12: #{ck_forward.3} parent=5 // pred_fallthru
      _
    %p74 = scmp.lt.s32.totalorder %s7, 2
    // Predicated region
    $region13: #{ck_forward.3} parent=5 // pred_check
      %p75 = pneg %p74
    $region14: #{ck_forward.3} parent=5 // pred_check_branch
      %77 = sbr.rel (%p75) target = $region16
    $region15: #{ck_forward.3} parent=5 // pred_region
      // Predicated region
      $region17: #{ck_forward.3} parent=15 // pred_check
        %p78 = pneg %p27
      $region18: #{ck_forward.3} parent=15 // pred_check_branch
        %80 = sbr.rel (%p78) target = $region20
      $region19: #{ck_forward.3} parent=15 // pred_region
        %p81 = scmp.lt.s32.totalorder %s7, 1
        %s82 = scalar_select %p81, %s7, 1
        %s83 = smul.addr %s82, 8
        %s84 = smul.addr %s83, 8
        %s85 = scalar_lea.vmem %s0, %s84
      $region20: #{ck_forward.3} parent=15 // pred_fallthru
        _
    $region16: #{ck_forward.3} parent=5 // pred_fallthru
      _
    %p86 = scmp.le.s32.totalorder 1, %s7
    %p87 = scmp.lt.s32.totalorder %s7, 3
    %p88 = pnand %p86, %p87
    %p89 = pneg %p88
    // Predicated region
    $region21: #{ck_forward.3} parent=5 // pred_check
      _
    $region22: #{ck_forward.3} parent=5 // pred_check_branch
      %91 = sbr.rel (%p88) target = $region24
    $region23: #{ck_forward.3} parent=5 // pred_region
      %s92 = ssub.s32 %s7, 1
      %p93 = scmp.lt.s32.totalorder %s12, 1
      %s94 = scalar_select %p93, %s12, 1
      %s95 = smul.addr %s94, 8
      %s96 = smul.addr %s95, 8
      %s97 = scalar_lea.vmem %s0, %s96
      %p98 = pneg %p33
      %p99 = pneg %p30
      %p100 = pneg %p59
      %p101 = pneg %p56
      %p102 = scmp.lt.s32.totalorder %s12, 1
      %s103 = scalar_select %p102, %s12, 1
      %s104 = smul.addr %s103, 8
      %s105 = smul.addr %s104, 8
      %s106 = scalar_lea.vmem %s1, %s105
      %p107 = scmp.lt.s32.totalorder %s12, 1
      %s108 = scalar_select %p107, %s12, 1
      %s109 = smul.addr %s108, 8
      %s110 = smul.addr %s109, 8
      %s111 = scalar_lea.vmem %s0, %s110
      %p112 = scmp.lt.s32.totalorder %s12, 1
      %s113 = scalar_select %p112, %s12, 1
      %s114 = smul.addr %s113, 8
      %s115 = smul.addr %s114, 8
      %s116 = scalar_lea.vmem %s1, %s115
      %v117 = vld [vmem:[%s111] sm:$0xff]
      %v118 = vld [vmem:[%s111 + $0x8] sm:$0xff]
      %v119 = vld [vmem:[%s111 + $0x10] sm:$0xff]
      %v120 = vld [vmem:[%s111 + $0x18] sm:$0xff]
      %v121 = vld [vmem:[%s111 + $0x20] sm:$0xff]
      %v122 = vld [vmem:[%s111 + $0x28] sm:$0xff]
      %v123 = vld [vmem:[%s111 + $0x30] sm:$0xff]
      %v124 = vld [vmem:[%s111 + $0x38] sm:$0xff]
      %v125 = vlaneseq
      %v126 = vshrl.u32 %v125, 7
      %v127 = vadd.s32 %v126, 8
      %v128 = vadd.s32 %v126, 16
      %v129 = vadd.s32 %v126, 24
      %v130 = vadd.s32 %v126, 32
      %v131 = vadd.s32 %v126, 40
      %v132 = vadd.s32 %v126, 48
      %v133 = vadd.s32 %v126, 56
      %vm134 = vcmp.lt.s32.totalorder %v126, 64
      %vm135 = vcmp.lt.s32.totalorder %v127, 64
      %vm136 = vcmp.lt.s32.totalorder %v128, 64
      %vm137 = vcmp.lt.s32.totalorder %v129, 64
      %vm138 = vcmp.lt.s32.totalorder %v130, 64
      %vm139 = vcmp.lt.s32.totalorder %v131, 64
      %vm140 = vcmp.lt.s32.totalorder %v132, 64
      %vm141 = vcmp.lt.s32.totalorder %v133, 64
      %v142 = vsel %vm134, %v117, 0.0
      %v143 = vsel %vm135, %v118, 0.0
      %v144 = vsel %vm136, %v119, 0.0
      %v145 = vsel %vm137, %v120, 0.0
      %v146 = vsel %vm138, %v121, 0.0
      %v147 = vsel %vm139, %v122, 0.0
      %v148 = vsel %vm140, %v123, 0.0
      %v149 = vsel %vm141, %v124, 0.0
      %v150 = vadd.f32 %v142, %v143
      %v151 = vadd.f32 %v150, %v144
      %v152 = vadd.f32 %v151, %v145
      %v153 = vadd.f32 %v152, %v146
      %v154 = vadd.f32 %v153, %v147
      %v155 = vadd.f32 %v154, %v148
      %v156 = vadd.f32 %v155, %v149
      %v157 = vrot.slane %v156, 4
      %v158 = vadd.f32 %v156, %v157
      %v159 = vrot.slane %v158, 2
      %v160 = vadd.f32 %v158, %v159
      %v161 = vrot.slane %v160, 1
      %v162 = vadd.f32 %v160, %v161
      %v163 = vmul.f32 %v162, 0.015625
      %v164 = vsub.f32 %v117, %v163
      %v165 = vsub.f32 %v118, %v163
      %v166 = vsub.f32 %v119, %v163
      %v167 = vsub.f32 %v120, %v163
      %v168 = vsub.f32 %v121, %v163
      %v169 = vsub.f32 %v122, %v163
      %v170 = vsub.f32 %v123, %v163
      %v171 = vsub.f32 %v124, %v163
      %v172 = vsel %vm134, %v164, 0.0
      %v173 = vsel %vm135, %v165, 0.0
      %v174 = vsel %vm136, %v166, 0.0
      %v175 = vsel %vm137, %v167, 0.0
      %v176 = vsel %vm138, %v168, 0.0
      %v177 = vsel %vm139, %v169, 0.0
      %v178 = vsel %vm140, %v170, 0.0
      %v179 = vsel %vm141, %v171, 0.0
      %v180 = vmul.f32 %v172, %v172
      %v181 = vmul.f32 %v173, %v173
      %v182 = vmul.f32 %v174, %v174
      %v183 = vmul.f32 %v175, %v175
      %v184 = vmul.f32 %v176, %v176
      %v185 = vmul.f32 %v177, %v177
      %v186 = vmul.f32 %v178, %v178
      %v187 = vmul.f32 %v179, %v179
      %v188 = vadd.f32 %v180, %v181
      %v189 = vadd.f32 %v188, %v182
      %v190 = vadd.f32 %v189, %v183
      %v191 = vadd.f32 %v190, %v184
      %v192 = vadd.f32 %v191, %v185
      %v193 = vadd.f32 %v192, %v186
      %v194 = vadd.f32 %v193, %v187
      %v195 = vrot.slane %v194, 4
      %v196 = vadd.f32 %v194, %v195
      %v197 = vrot.slane %v196, 2
      %v198 = vadd.f32 %v196, %v197
      %v199 = vrot.slane %v198, 1
      %v200 = vadd.f32 %v198, %v199
      %v201 = vmul.f32 %v200, 0.015625
      %v202 = vadd.f32 %v201, 1e-05
      %v203 = vrsqrt.pop %v202
      %v204 = vmul.f32 %v203, %v202
      %v205 = vmul.f32 %v204, %v203
      %v206 = vmul.f32 0.5, %v205
      %v207 = vsub.f32 1.5, %v206
      %v208 = vmul.f32 %v203, %v207
      %vm209 = vweird.f32 %v202
      %vm210 = vweird.f32 %v203
      %vm211 = vmor %vm209, %vm210
      %v212 = vsel %vm211, %v203, %v208
      %v213 = vmul.f32 %v164, %v212
      %v214 = vmul.f32 %v165, %v212
      %v215 = vmul.f32 %v166, %v212
      %v216 = vmul.f32 %v167, %v212
      %v217 = vmul.f32 %v168, %v212
      %v218 = vmul.f32 %v169, %v212
      %v219 = vmul.f32 %v170, %v212
      %v220 = vmul.f32 %v171, %v212
      %vm221 = vcmp.ge.f32.partialorder %v213, 0.0
      %vm222 = vcmp.ge.f32.partialorder %v214, 0.0
      %vm223 = vcmp.ge.f32.partialorder %v215, 0.0
      %vm224 = vcmp.ge.f32.partialorder %v216, 0.0
      %vm225 = vcmp.ge.f32.partialorder %v217, 0.0
      %vm226 = vcmp.ge.f32.partialorder %v218, 0.0
      %vm227 = vcmp.ge.f32.partialorder %v219, 0.0
      %vm228 = vcmp.ge.f32.partialorder %v220, 0.0
      %v229 = vmul.f32 %v213, 0.01
      %v230 = vmul.f32 %v214, 0.01
      %v231 = vmul.f32 %v215, 0.01
      %v232 = vmul.f32 %v216, 0.01
      %v233 = vmul.f32 %v217, 0.01
      %v234 = vmul.f32 %v218, 0.01
      %v235 = vmul.f32 %v219, 0.01
      %v236 = vmul.f32 %v220, 0.01
      %v237 = vsel %vm221, %v213, %v229
      %v238 = vsel %vm222, %v214, %v230
      %v239 = vsel %vm223, %v215, %v231
      %v240 = vsel %vm224, %v216, %v232
      %v241 = vsel %vm225, %v217, %v233
      %v242 = vsel %vm226, %v218, %v234
      %v243 = vsel %vm227, %v219, %v235
      %v244 = vsel %vm228, %v220, %v236
      %245 = vst [vmem:[%s116] sm:$0xff] %v237
      %246 = vst [vmem:[%s116 + $0x8] sm:$0xff] %v238
      %247 = vst [vmem:[%s116 + $0x10] sm:$0xff] %v239
      %248 = vst [vmem:[%s116 + $0x18] sm:$0xff] %v240
      %249 = vst [vmem:[%s116 + $0x20] sm:$0xff] %v241
      %250 = vst [vmem:[%s116 + $0x28] sm:$0xff] %v242
      %251 = vst [vmem:[%s116 + $0x30] sm:$0xff] %v243
      %252 = vst [vmem:[%s116 + $0x38] sm:$0xff] %v244
      %p253 = scmp.lt.s32.totalorder %s12, 1
      %s254 = scalar_select %p253, %s12, 1
      %s255 = smul.addr %s254, 8
      %s256 = smul.addr %s255, 8
      %s257 = scalar_lea.vmem %s1, %s256
      // Predicated region
      $region25: #{ck_forward.3} parent=23 // pred_check
        %p258 = pneg %p56
      $region26: #{ck_forward.3} parent=23 // pred_check_branch
        %260 = sbr.rel (%p258) target = $region28
      $region27: #{ck_forward.3} parent=23 // pred_region
        _
      $region28: #{ck_forward.3} parent=23 // pred_fallthru
        _
    $region24: #{ck_forward.3} parent=5 // pred_fallthru
      _
    %p261 = scmp.le.s32.totalorder 2, %s7
    // Predicated region
    $region29: #{ck_forward.3} parent=5 // pred_check
      %p262 = pneg %p261
    $region30: #{ck_forward.3} parent=5 // pred_check_branch
      %264 = sbr.rel (%p262) target = $region32
    $region31: #{ck_forward.3} parent=5 // pred_region
      %s265 = ssub.s32 %s7, 2
      // Predicated region
      $region33: #{ck_forward.3} parent=31 // pred_check
        %p266 = pneg %p62
      $region34: #{ck_forward.3} parent=31 // pred_check_branch
        %268 = sbr.rel (%p266) target = $region36
      $region35: #{ck_forward.3} parent=31 // pred_region
        %p269 = scmp.lt.s32.totalorder %s13, 1
        %s270 = scalar_select %p269, %s13, 1
        %s271 = smul.addr %s270, 8
        %s272 = smul.addr %s271, 8
        %s273 = scalar_lea.vmem %s1, %s272
      $region36: #{ck_forward.3} parent=31 // pred_fallthru
        _
    $region32: #{ck_forward.3} parent=5 // pred_fallthru
      _
  $region6: #{ck_forward.3} parent=0 // loop_footer
    %s11 = sadd.s32 1, %s7
  $region7: #{ck_forward.3} parent=0 // loop_footer_branch
    %6 = sbr.rel target = $region3
  $region8: #{ck_forward.3} parent=0 // loop_exit
    _

// kernel: ck_forward.2
$region0: #{ck_forward.2}
  #allocation0 [shape = 'u32[]', space=smem, size = 0x4, offset = 0x4, fixed_abs, tag = 'smem constant byte address 0x4 - core index']
  #allocation1 [shape = 'u32[72,128]{1,0:T(1,128)}', space=vmem, size = 0x9000, scoped, tag = 'internal scratch']
  %s0 = inlined_call_operand.vmem [shape: bf16[128,128], index: 0, kind: input, shape index: {}]
  %s1 = inlined_call_operand.vmem [shape: bf16[128,128], index: 1, kind: input, shape index: {}]
  %s2 = inlined_call_operand.vmem [shape: f32[1,128], index: 2, kind: input, shape index: {}]
  %s3 = inlined_call_operand.vmem [shape: f32[128,128], index: 3, kind: output, shape index: {}]
  %s4 = sld [smem:[#allocation0]]
  $region30: #{ck_forward.2} parent=0
    _
  %s6 = ssub.s32 1, %s4
  %s7 = scalar_select 0, %s6, %s4
  // Predicated region
  $region2: #{ck_forward.2} parent=0 // pred_check
    _
  $region3: #{ck_forward.2} parent=0 // pred_check_branch
    %9 = sbr.rel (0) target = $region5
  $region4: #{ck_forward.2} parent=0 // pred_region
    _
  $region5: #{ck_forward.2} parent=0 // pred_fallthru
    _
  // Predicated region
  $region6: #{ck_forward.2} parent=0 // pred_check
    _
  $region7: #{ck_forward.2} parent=0 // pred_check_branch
    %11 = sbr.rel (0) target = $region9
  $region8: #{ck_forward.2} parent=0 // pred_region
    _
  $region9: #{ck_forward.2} parent=0 // pred_fallthru
    _
  // Predicated region
  $region10: #{ck_forward.2} parent=0 // pred_check
    _
  $region11: #{ck_forward.2} parent=0 // pred_check_branch
    %13 = sbr.rel (0) target = $region13
  $region12: #{ck_forward.2} parent=0 // pred_region
    _
  $region13: #{ck_forward.2} parent=0 // pred_fallthru
    _
  %v14 = vld [vmem:[%s0] sm:$0xf]
  %v15 = vld [vmem:[%s0 + $0x4] sm:$0xf]
  %v16 = vld [vmem:[%s0 + $0x8] sm:$0xf]
  %v17 = vld [vmem:[%s0 + $0xc] sm:$0xf]
  %v18 = vld [vmem:[%s0 + $0x10] sm:$0xf]
  %v19 = vld [vmem:[%s0 + $0x14] sm:$0xf]
  %v20 = vld [vmem:[%s0 + $0x18] sm:$0xf]
  %v21 = vld [vmem:[%s0 + $0x1c] sm:$0xf]
  %v22 = vld [vmem:[%s0 + $0x20] sm:$0xf]
  %v23 = vld [vmem:[%s0 + $0x24] sm:$0xf]
  %v24 = vld [vmem:[%s0 + $0x28] sm:$0xf]
  %v25 = vld [vmem:[%s0 + $0x2c] sm:$0xf]
  %v26 = vld [vmem:[%s0 + $0x30] sm:$0xf]
  %v27 = vld [vmem:[%s0 + $0x34] sm:$0xf]
  %v28 = vld [vmem:[%s0 + $0x38] sm:$0xf]
  %v29 = vld [vmem:[%s0 + $0x3c] sm:$0xf]
  %v30 = vld [vmem:[%s1] sm:$0xf]
  %v31 = vld [vmem:[%s1 + $0x4] sm:$0xf]
  %v32 = vld [vmem:[%s1 + $0x8] sm:$0xf]
  %v33 = vld [vmem:[%s1 + $0xc] sm:$0xf]
  %v34 = vld [vmem:[%s1 + $0x10] sm:$0xf]
  %v35 = vld [vmem:[%s1 + $0x14] sm:$0xf]
  %v36 = vld [vmem:[%s1 + $0x18] sm:$0xf]
  %v37 = vld [vmem:[%s1 + $0x1c] sm:$0xf]
  %v38 = vld [vmem:[%s1 + $0x20] sm:$0xf]
  %v39 = vld [vmem:[%s1 + $0x24] sm:$0xf]
  %v40 = vld [vmem:[%s1 + $0x28] sm:$0xf]
  %v41 = vld [vmem:[%s1 + $0x2c] sm:$0xf]
  %v42 = vld [vmem:[%s1 + $0x30] sm:$0xf]
  %v43 = vld [vmem:[%s1 + $0x34] sm:$0xf]
  %v44 = vld [vmem:[%s1 + $0x38] sm:$0xf]
  %v45 = vld [vmem:[%s1 + $0x3c] sm:$0xf]
  %v62 = vunpack.c.l.b16 %v14
  %v63 = vunpack.c.l.b16 %v15
  %v64 = vunpack.c.l.b16 %v16
  %v65 = vunpack.c.l.b16 %v17
  %v66 = vunpack.c.l.b16 %v18
  %v67 = vunpack.c.l.b16 %v19
  %v68 = vunpack.c.l.b16 %v20
  %v69 = vunpack.c.l.b16 %v21
  %v70 = vunpack.c.l.b16 %v22
  %v71 = vunpack.c.l.b16 %v23
  %v72 = vunpack.c.l.b16 %v24
  %v73 = vunpack.c.l.b16 %v25
  %v74 = vunpack.c.l.b16 %v26
  %v75 = vunpack.c.l.b16 %v27
  %v76 = vunpack.c.l.b16 %v28
  %v77 = vunpack.c.l.b16 %v29
  %v78 = vpack.c.b16 %v63, %v62
  %v79 = vpack.c.b16 %v65, %v64
  %v80 = vpack.c.b16 %v67, %v66
  %v81 = vpack.c.b16 %v69, %v68
  %v82 = vpack.c.b16 %v71, %v70
  %v83 = vpack.c.b16 %v73, %v72
  %v84 = vpack.c.b16 %v75, %v74
  %v85 = vpack.c.b16 %v77, %v76
  %v110 = vunpack.c.l.b16 %v30
  %v111 = vunpack.c.l.b16 %v31
  %v112 = vunpack.c.l.b16 %v32
  %v113 = vunpack.c.l.b16 %v33
  %v114 = vunpack.c.l.b16 %v34
  %v115 = vunpack.c.l.b16 %v35
  %v116 = vunpack.c.l.b16 %v36
  %v117 = vunpack.c.l.b16 %v37
  %v118 = vunpack.c.l.b16 %v38
  %v119 = vunpack.c.l.b16 %v39
  %v120 = vunpack.c.l.b16 %v40
  %v121 = vunpack.c.l.b16 %v41
  %v122 = vunpack.c.l.b16 %v42
  %v123 = vunpack.c.l.b16 %v43
  %v124 = vunpack.c.l.b16 %v44
  %v125 = vunpack.c.l.b16 %v45
  %v126 = vpack.c.b16 %v111, %v110
  %v127 = vpack.c.b16 %v113, %v112
  %v128 = vpack.c.b16 %v115, %v114
  %v129 = vpack.c.b16 %v117, %v116
  %v130 = vpack.c.b16 %v119, %v118
  %v131 = vpack.c.b16 %v121, %v120
  %v132 = vpack.c.b16 %v123, %v122
  %v133 = vpack.c.b16 %v125, %v124
  %142 = vmatpush.bf16.msra.mxu0 %v133
  %143 = vmatpush.bf16.msra.mxu0 %v132
  %144 = vmatpush.bf16.msra.mxu0 %v131
  %145 = vmatpush.bf16.msra.mxu0 %v130
  %146 = vmatpush.bf16.msra.mxu0 %v129
  %147 = vmatpush.bf16.msra.mxu0 %v128
  %148 = vmatpush.bf16.msra.mxu0 %v127
  %149 = vmatpush.bf16.msra.mxu0 %v126
  %150 = vmatmul.bf16.gmra.mxu0 %v78
  %v151 = vpop.f32.mrf.mxu0
  %v152 = vadd.f32 0.0, %v151
  %v153 = vpop.f32.mrf.mxu0
  %v154 = vadd.f32 0.0, %v153
  %155 = vmatmul.bf16.gmra.mxu0 %v79
  %v156 = vpop.f32.mrf.mxu0
  %v157 = vadd.f32 0.0, %v156
  %v158 = vpop.f32.mrf.mxu0
  %v159 = vadd.f32 0.0, %v158
  %160 = vmatmul.bf16.gmra.mxu0 %v80
  %v161 = vpop.f32.mrf.mxu0
  %v162 = vadd.f32 0.0, %v161
  %v163 = vpop.f32.mrf.mxu0
  %v164 = vadd.f32 0.0, %v163
  %165 = vmatmul.bf16.gmra.mxu0 %v81
  %v166 = vpop.f32.mrf.mxu0
  %v167 = vadd.f32 0.0, %v166
  %v168 = vpop.f32.mrf.mxu0
  %v169 = vadd.f32 0.0, %v168
  %170 = vmatmul.bf16.gmra.mxu0 %v82
  %v171 = vpop.f32.mrf.mxu0
  %v172 = vadd.f32 0.0, %v171
  %v173 = vpop.f32.mrf.mxu0
  %v174 = vadd.f32 0.0, %v173
  %175 = vmatmul.bf16.gmra.mxu0 %v83
  %v176 = vpop.f32.mrf.mxu0
  %v177 = vadd.f32 0.0, %v176
  %v178 = vpop.f32.mrf.mxu0
  %v179 = vadd.f32 0.0, %v178
  %180 = vmatmul.bf16.gmra.mxu0 %v84
  %v181 = vpop.f32.mrf.mxu0
  %v182 = vadd.f32 0.0, %v181
  %v183 = vpop.f32.mrf.mxu0
  %v184 = vadd.f32 0.0, %v183
  %185 = vmatmul.bf16.gmra.mxu0 %v85
  %v186 = vpop.f32.mrf.mxu0
  %v187 = vadd.f32 0.0, %v186
  %v188 = vpop.f32.mrf.mxu0
  %v189 = vadd.f32 0.0, %v188
  %190 = vdwg.mxu0
  %p191 = scmp.eq.s32.totalorder 0, 0
  // Predicated region
  $region14: #{ck_forward.2} parent=0 // pred_check
    %p192 = pneg %p191
  $region15: #{ck_forward.2} parent=0 // pred_check_branch
    %194 = sbr.rel (%p192) target = $region17
  $region16: #{ck_forward.2} parent=0 // pred_region
    %v195 = vld [vmem:[%s2] sm:$0x1]
    %v197 = vperm.slane %v195, 0
    %v199 = vadd.f32 %v152, %v197
    %v200 = vadd.f32 %v154, %v197
    %v201 = vadd.f32 %v157, %v197
    %v202 = vadd.f32 %v159, %v197
    %v203 = vadd.f32 %v162, %v197
    %v204 = vadd.f32 %v164, %v197
    %v205 = vadd.f32 %v167, %v197
    %v206 = vadd.f32 %v169, %v197
    %v207 = vadd.f32 %v172, %v197
    %v208 = vadd.f32 %v174, %v197
    %v209 = vadd.f32 %v177, %v197
    %v210 = vadd.f32 %v179, %v197
    %v211 = vadd.f32 %v182, %v197
    %v212 = vadd.f32 %v184, %v197
    %v213 = vadd.f32 %v187, %v197
    %v214 = vadd.f32 %v189, %v197
    %215 = vst [vmem:[%s3] sm:$0xff] %v199
    %216 = vst [vmem:[%s3 + $0x8] sm:$0xff] %v200
    %217 = vst [vmem:[%s3 + $0x10] sm:$0xff] %v201
    %218 = vst [vmem:[%s3 + $0x18] sm:$0xff] %v202
    %219 = vst [vmem:[%s3 + $0x20] sm:$0xff] %v203
    %220 = vst [vmem:[%s3 + $0x28] sm:$0xff] %v204
    %221 = vst [vmem:[%s3 + $0x30] sm:$0xff] %v205
    %222 = vst [vmem:[%s3 + $0x38] sm:$0xff] %v206
    %223 = vst [vmem:[%s3 + $0x40] sm:$0xff] %v207
    %224 = vst [vmem:[%s3 + $0x48] sm:$0xff] %v208
    %225 = vst [vmem:[%s3 + $0x50] sm:$0xff] %v209
    %226 = vst [vmem:[%s3 + $0x58] sm:$0xff] %v210
    %227 = vst [vmem:[%s3 + $0x60] sm:$0xff] %v211
    %228 = vst [vmem:[%s3 + $0x68] sm:$0xff] %v212
    %229 = vst [vmem:[%s3 + $0x70] sm:$0xff] %v213
    %230 = vst [vmem:[%s3 + $0x78] sm:$0xff] %v214
  $region17: #{ck_forward.2} parent=0 // pred_fallthru
    _
  %p231 = scmp.gt.s32.totalorder 0, 0
  // Predicated region
  $region18: #{ck_forward.2} parent=0 // pred_check
    %p232 = pneg %p231
  $region19: #{ck_forward.2} parent=0 // pred_check_branch
    %234 = sbr.rel (%p232) target = $region21
  $region20: #{ck_forward.2} parent=0 // pred_region
    %v235 = vld [vmem:[%s3] sm:$0xff]
    %v236 = vld [vmem:[%s3 + $0x8] sm:$0xff]
    %v237 = vld [vmem:[%s3 + $0x10] sm:$0xff]
    %v238 = vld [vmem:[%s3 + $0x18] sm:$0xff]
    %v239 = vld [vmem:[%s3 + $0x20] sm:$0xff]
    %v240 = vld [vmem:[%s3 + $0x28] sm:$0xff]
    %v241 = vld [vmem:[%s3 + $0x30] sm:$0xff]
    %v242 = vld [vmem:[%s3 + $0x38] sm:$0xff]
    %v243 = vld [vmem:[%s3 + $0x40] sm:$0xff]
    %v244 = vld [vmem:[%s3 + $0x48] sm:$0xff]
    %v245 = vld [vmem:[%s3 + $0x50] sm:$0xff]
    %v246 = vld [vmem:[%s3 + $0x58] sm:$0xff]
    %v247 = vld [vmem:[%s3 + $0x60] sm:$0xff]
    %v248 = vld [vmem:[%s3 + $0x68] sm:$0xff]
    %v249 = vld [vmem:[%s3 + $0x70] sm:$0xff]
    %v250 = vld [vmem:[%s3 + $0x78] sm:$0xff]
    %v251 = vadd.f32 %v235, %v152
    %v252 = vadd.f32 %v236, %v154
    %v253 = vadd.f32 %v237, %v157
    %v254 = vadd.f32 %v238, %v159
    %v255 = vadd.f32 %v239, %v162
    %v256 = vadd.f32 %v240, %v164
    %v257 = vadd.f32 %v241, %v167
    %v258 = vadd.f32 %v242, %v169
    %v259 = vadd.f32 %v243, %v172
    %v260 = vadd.f32 %v244, %v174
    %v261 = vadd.f32 %v245, %v177
    %v262 = vadd.f32 %v246, %v179
    %v263 = vadd.f32 %v247, %v182
    %v264 = vadd.f32 %v248, %v184
    %v265 = vadd.f32 %v249, %v187
    %v266 = vadd.f32 %v250, %v189
    %267 = vst [vmem:[%s3] sm:$0xff] %v251
    %268 = vst [vmem:[%s3 + $0x8] sm:$0xff] %v252
    %269 = vst [vmem:[%s3 + $0x10] sm:$0xff] %v253
    %270 = vst [vmem:[%s3 + $0x18] sm:$0xff] %v254
    %271 = vst [vmem:[%s3 + $0x20] sm:$0xff] %v255
    %272 = vst [vmem:[%s3 + $0x28] sm:$0xff] %v256
    %273 = vst [vmem:[%s3 + $0x30] sm:$0xff] %v257
    %274 = vst [vmem:[%s3 + $0x38] sm:$0xff] %v258
    %275 = vst [vmem:[%s3 + $0x40] sm:$0xff] %v259
    %276 = vst [vmem:[%s3 + $0x48] sm:$0xff] %v260
    %277 = vst [vmem:[%s3 + $0x50] sm:$0xff] %v261
    %278 = vst [vmem:[%s3 + $0x58] sm:$0xff] %v262
    %279 = vst [vmem:[%s3 + $0x60] sm:$0xff] %v263
    %280 = vst [vmem:[%s3 + $0x68] sm:$0xff] %v264
    %281 = vst [vmem:[%s3 + $0x70] sm:$0xff] %v265
    %282 = vst [vmem:[%s3 + $0x78] sm:$0xff] %v266
  $region21: #{ck_forward.2} parent=0 // pred_fallthru
    _
  // Predicated region
  $region22: #{ck_forward.2} parent=0 // pred_check
    _
  $region23: #{ck_forward.2} parent=0 // pred_check_branch
    %284 = sbr.rel (0) target = $region25
  $region24: #{ck_forward.2} parent=0 // pred_region
    _
  $region25: #{ck_forward.2} parent=0 // pred_fallthru
    _
  // Predicated region
  $region26: #{ck_forward.2} parent=0 // pred_check
    _
  $region27: #{ck_forward.2} parent=0 // pred_check_branch
    %286 = sbr.rel (0) target = $region29
  $region28: #{ck_forward.2} parent=0 // pred_region
    _
  $region29: #{ck_forward.2} parent=0 // pred_fallthru
    _

</llo_original>
